<compile_context>
chip_gen: v7x
topology: tpu7x:2x2x1
jax: 0.10.0
libtpu: 0.0.40
codegen_flags: <defaults>
</compile_context>

<pallas_src>
import functools

import jax
import jax.numpy as jnp
from jax import lax
from jax.experimental import pallas as pl
from jax.experimental.pallas import tpu as pltpu

LN_EPS = 1e-12          # HF BERT layer_norm_eps
_ROW_TILE_CAP = 256     # MXU-M-friendly on v6e/v7x; >=2 grid steps for large row counts


def _vmem_limit_bytes():
    try:
        return int(pltpu.get_tpu_info().vmem_capacity_bytes * 3 // 4)
    except Exception:
        return 48 * 1024 * 1024   # safe on all generations (v7x physical VMEM is 64 MiB)


_VMEM_LIMIT = _vmem_limit_bytes()


def _cp(n_axes):
    return pltpu.CompilerParams(
        dimension_semantics=("parallel",) * n_axes,
        vmem_limit_bytes=_VMEM_LIMIT,
    )


def _row_tile(m, cap=_ROW_TILE_CAP):
    """Largest multiple-of-8 row tile <= cap that evenly divides m."""
    if m <= cap:
        return m
    for t in range(cap - cap % 8, 7, -8):
        if m % t == 0:
            return t
    # TODO(synk): awkward m (no multiple-of-8 divisor <= cap) would need a padded/masked
    # last tile with pl.cdiv; falls back to a full-array block here.
    return m


def _gelu(y):
    # TODO(synk): HF BERT default is exact erf GELU; tanh approximation used here.
    return 0.5 * y * (1.0 + jnp.tanh(0.7978845608028654 * (y + 0.044715 * y * y * y)))


def _layernorm(h, gamma, beta, eps):
    mu = jnp.mean(h, axis=-1, keepdims=True)
    var = jnp.mean((h - mu) * (h - mu), axis=-1, keepdims=True)
    return (h - mu) * lax.rsqrt(var + eps) * gamma + beta


# ----------------------------- Pallas kernels ------------------------------

def _ln_kernel(x_ref, g_ref, b_ref, o_ref, *, eps):
    x = x_ref[...].astype(jnp.float32)
    o_ref[...] = _layernorm(x, g_ref[...], b_ref[...], eps).astype(o_ref.dtype)


def layer_norm(x, gamma, beta):
    """Embedding LayerNorm: f32 in, bf16 out."""
    m, h = x.shape
    tm = _row_tile(m)
    return pl.pallas_call(
        functools.partial(_ln_kernel, eps=LN_EPS),
        out_shape=jax.ShapeDtypeStruct((m, h), jnp.bfloat16),
        grid=(m // tm,),
        in_specs=[
            pl.BlockSpec((tm, h), lambda i: (i, 0)),
            pl.BlockSpec((1, h), lambda i: (0, 0)),
            pl.BlockSpec((1, h), lambda i: (0, 0)),
        ],
        out_specs=pl.BlockSpec((tm, h), lambda i: (i, 0)),
        compiler_params=_cp(1),
    )(x, gamma.reshape(1, h), beta.reshape(1, h))


def _attn_block_kernel(x_ref, m_ref, qkvw_ref, qkvb_ref, aow_ref, aob_ref,
                       g_ref, bt_ref, o_ref, ctx_ref, *, n_heads, dh, scale, eps):
    """Fused QKV dense + MHA + attn-out dense + residual + LayerNorm for one batch row."""
    x_bf = x_ref[0]                                   # (S, H) bf16
    x_f32 = x_bf.astype(jnp.float32)                  # residual path in f32
    mask = m_ref[0]                                   # (1, S) f32 additive mask

    qkv = jnp.dot(x_bf, qkvw_ref[...],
                  preferred_element_type=jnp.float32) + qkvb_ref[...]   # (S, 3H) f32
    hsz = n_heads * dh

    # Per-head attention; each head's context is stored straight into VMEM scratch
    # (no concatenate, head result dies immediately -> low vreg/VMEM pressure).
    for h in range(n_heads):
        q = qkv[:, h * dh:(h + 1) * dh].astype(jnp.bfloat16)
        k = qkv[:, hsz + h * dh:hsz + (h + 1) * dh].astype(jnp.bfloat16)
        v = qkv[:, 2 * hsz + h * dh:2 * hsz + (h + 1) * dh].astype(jnp.bfloat16)
        s = lax.dot_general(q, k, (((1,), (1,)), ((), ())),
                            preferred_element_type=jnp.float32) * scale
        s = s + mask
        s = s - jnp.max(s, axis=-1, keepdims=True)
        p = jnp.exp(s)
        p = p * pl.reciprocal(jnp.sum(p, axis=-1, keepdims=True), approx=True)
        ctx_ref[:, h * dh:(h + 1) * dh] = jnp.dot(
            p.astype(jnp.bfloat16), v, preferred_element_type=jnp.float32)

    ctx = ctx_ref[...].astype(jnp.bfloat16)           # (S, H)
    y = jnp.dot(ctx, aow_ref[...],
                preferred_element_type=jnp.float32) + aob_ref[...]
    hres = y + x_f32                                  # residual
    o_ref[0] = _layernorm(hres, g_ref[...], bt_ref[...], eps).astype(o_ref.dtype)


def attention_block(x, ext_mask, qkv_w, qkv_b, ao_w, ao_b, gamma, beta, n_heads):
    b, s, h = x.shape
    three_h = qkv_w.shape[1]
    dh = h // n_heads
    scale = 1.0 / (dh ** 0.5)
    return pl.pallas_call(
        functools.partial(_attn_block_kernel, n_heads=n_heads, dh=dh,
                          scale=scale, eps=LN_EPS),
        out_shape=jax.ShapeDtypeStruct((b, s, h), jnp.bfloat16),
        grid=(b,),
        in_specs=[
            pl.BlockSpec((1, s, h), lambda i: (i, 0, 0)),
            pl.BlockSpec((1, 1, s), lambda i: (i, 0, 0)),
            pl.BlockSpec((h, three_h), lambda i: (0, 0)),
            pl.BlockSpec((1, three_h), lambda i: (0, 0)),
            pl.BlockSpec((h, h), lambda i: (0, 0)),
            pl.BlockSpec((1, h), lambda i: (0, 0)),
            pl.BlockSpec((1, h), lambda i: (0, 0)),
            pl.BlockSpec((1, h), lambda i: (0, 0)),
        ],
        out_specs=pl.BlockSpec((1, s, h), lambda i: (i, 0, 0)),
        scratch_shapes=[pltpu.VMEM((s, h), jnp.float32)],
        compiler_params=_cp(1),
    )(x, ext_mask, qkv_w, qkv_b.reshape(1, three_h), ao_w, ao_b.reshape(1, h),
      gamma.reshape(1, h), beta.reshape(1, h))


def _ffn_ln_kernel(x_ref, w1_ref, b1_ref, w2_ref, b2_ref, g_ref, bt_ref, o_ref, *, eps):
    x_bf = x_ref[...]                                  # (tm, H) bf16
    h1 = jnp.dot(x_bf, w1_ref[...],
                 preferred_element_type=jnp.float32) + b1_ref[...]
    h1 = _gelu(h1)                                     # (tm, INTER) stays in VMEM
    y = jnp.dot(h1.astype(jnp.bfloat16), w2_ref[...],
                preferred_element_type=jnp.float32) + b2_ref[...]
    hres = y + x_bf.astype(jnp.float32)                # residual = kernel input
    o_ref[...] = _layernorm(hres, g_ref[...], bt_ref[...], eps).astype(o_ref.dtype)


def ffn_ln(x, w1, b1, w2, b2, gamma, beta):
    m, h = x.shape
    inter = w1.shape[1]
    tm = _row_tile(m)
    # TODO(synk): for real BERT widths on v7x (64 MiB VMEM), tile the FFN over INTER with
    # an 'arbitrary' reduction axis and a (tm, H) f32 accumulator instead of holding both
    # weights fully resident.
    return pl.pallas_call(
        functools.partial(_ffn_ln_kernel, eps=LN_EPS),
        out_shape=jax.ShapeDtypeStruct((m, h), jnp.bfloat16),
        grid=(m // tm,),
        in_specs=[
            pl.BlockSpec((tm, h), lambda i: (i, 0)),
            pl.BlockSpec((h, inter), lambda i: (0, 0)),
            pl.BlockSpec((1, inter), lambda i: (0, 0)),
            pl.BlockSpec((inter, h), lambda i: (0, 0)),
            pl.BlockSpec((1, h), lambda i: (0, 0)),
            pl.BlockSpec((1, h), lambda i: (0, 0)),
            pl.BlockSpec((1, h), lambda i: (0, 0)),
        ],
        out_specs=pl.BlockSpec((tm, h), lambda i: (i, 0)),
        compiler_params=_cp(1),
    )(x, w1, b1.reshape(1, inter), w2, b2.reshape(1, h),
      gamma.reshape(1, h), beta.reshape(1, h))


def _pool_cls_kernel(x_ref, pw_ref, pb_ref, cw_ref, cb_ref, o_ref):
    pooled = jnp.tanh(jnp.dot(x_ref[...], pw_ref[...],
                              preferred_element_type=jnp.float32) + pb_ref[...])
    logits = jnp.dot(pooled.astype(jnp.bfloat16), cw_ref[...],
                     preferred_element_type=jnp.float32) + cb_ref[...]
    o_ref[...] = logits.astype(o_ref.dtype)


def pooler_classifier(cls, pool_w, pool_b, cls_w, cls_b):
    b, h = cls.shape
    out_dim = cls_w.shape[1]
    return pl.pallas_call(
        _pool_cls_kernel,
        out_shape=jax.ShapeDtypeStruct((b, out_dim), jnp.float32),
        grid=(1,),
        in_specs=[
            pl.BlockSpec((b, h), lambda i: (0, 0)),
            pl.BlockSpec((h, h), lambda i: (0, 0)),
            pl.BlockSpec((1, h), lambda i: (0, 0)),
            pl.BlockSpec((h, out_dim), lambda i: (0, 0)),
            pl.BlockSpec((1, out_dim), lambda i: (0, 0)),
        ],
        out_specs=pl.BlockSpec((b, out_dim), lambda i: (0, 0)),
        compiler_params=_cp(1),
    )(cls, pool_w, pool_b.reshape(1, h), cls_w, cls_b.reshape(1, out_dim))


# --------------------------- parameter construction ------------------------

def init_params(key, *, vocab, max_pos, type_vocab, hidden, inter, n_layers, out_dim):
    std = 0.02
    keys = jax.random.split(key, 4 + n_layers)

    def norm(k, shape, dtype=jnp.bfloat16):
        return (jax.random.normal(k, shape, jnp.float32) * std).astype(dtype)

    params = {
        "word_emb": norm(keys[0], (vocab, hidden), jnp.float32),
        "pos_emb": norm(keys[1], (max_pos, hidden), jnp.float32),
        "type_emb": norm(keys[2], (type_vocab, hidden), jnp.float32),
        "emb_ln_g": jnp.ones((hidden,), jnp.float32),
        "emb_ln_b": jnp.zeros((hidden,), jnp.float32),
        "layers": [],
    }
    for l in range(n_layers):
        lk = jax.random.split(keys[4 + l], 6)
        qkv_w = jnp.concatenate(
            [norm(lk[0], (hidden, hidden), jnp.float32),
             norm(lk[1], (hidden, hidden), jnp.float32),
             norm(lk[2], (hidden, hidden), jnp.float32)], axis=1)        # fused (H, 3H)
        params["layers"].append({
            "qkv_w": qkv_w.astype(jnp.bfloat16),
            "qkv_b": jnp.zeros((3 * hidden,), jnp.float32),
            "ao_w": norm(lk[3], (hidden, hidden)),
            "ao_b": jnp.zeros((hidden,), jnp.float32),
            "ln1_g": jnp.ones((hidden,), jnp.float32),
            "ln1_b": jnp.zeros((hidden,), jnp.float32),
            "i_w": norm(lk[4], (hidden, inter)),
            "i_b": jnp.zeros((inter,), jnp.float32),
            "o_w": norm(lk[5], (inter, hidden)),
            "o_b": jnp.zeros((hidden,), jnp.float32),
            "ln2_g": jnp.ones((hidden,), jnp.float32),
            "ln2_b": jnp.zeros((hidden,), jnp.float32),
        })
    pk = jax.random.split(keys[3], 2)
    params["pool_w"] = norm(pk[0], (hidden, hidden))
    params["pool_b"] = jnp.zeros((hidden,), jnp.float32)
    params["cls_w"] = norm(pk[1], (hidden, out_dim))
    params["cls_b"] = jnp.zeros((out_dim,), jnp.float32)
    return params


# ------------------------------- forward pass -------------------------------

def bert_classifier_forward(params, input_ids, attention_mask, *, n_heads):
    B, S = input_ids.shape
    H = params["word_emb"].shape[1]

    # Embeddings (gathers are plain-JAX glue). token_type_ids fixed to zero segment.
    pos_ids = jnp.arange(S, dtype=jnp.int32)
    emb = (params["word_emb"][input_ids]
           + params["pos_emb"][pos_ids][None, :, :]
           + params["type_emb"][jnp.zeros_like(input_ids)])
    x = layer_norm(emb.reshape(B * S, H).astype(jnp.float32),
                   params["emb_ln_g"], params["emb_ln_b"])               # (B*S, H) bf16

    # Additive attention mask, HF convention: (1 - mask) * -10000, shape (B, 1, S).
    ext_mask = (1.0 - attention_mask.astype(jnp.float32))[:, None, :] * -10000.0

    for layer in params["layers"]:
        x3 = attention_block(x.reshape(B, S, H), ext_mask,
                             layer["qkv_w"], layer["qkv_b"],
                             layer["ao_w"], layer["ao_b"],
                             layer["ln1_g"], layer["ln1_b"], n_heads)    # (B, S, H) bf16
        x = ffn_ln(x3.reshape(B * S, H), layer["i_w"], layer["i_b"],
                   layer["o_w"], layer["o_b"],
                   layer["ln2_g"], layer["ln2_b"])                       # (B*S, H) bf16

    # Pooler: dense + tanh on the [CLS] token, then classifier head (single fused call).
    cls = x.reshape(B, S, H)[:, 0, :]
    logits = pooler_classifier(cls, params["pool_w"], params["pool_b"],
                               params["cls_w"], params["cls_b"])
    return logits


# ----------------------------------- main -----------------------------------

if __name__ == "__main__":
    B, S = 2, 8
    VOCAB, MAX_POS, TYPE_VOCAB = 128, 16, 2
    H, NH, INTER, LAYERS, OUT_DIM = 32, 4, 64, 2, 2

    key = jax.random.PRNGKey(0)
    pkey, ikey = jax.random.split(key)
    params = init_params(
        pkey, vocab=VOCAB, max_pos=MAX_POS, type_vocab=TYPE_VOCAB,
        hidden=H, inter=INTER, n_layers=LAYERS, out_dim=OUT_DIM,
    )
    input_ids = jax.random.randint(ikey, (B, S), 0, VOCAB, dtype=jnp.int32)
    attention_mask = jnp.ones((B, S), dtype=jnp.int32)

    logits = bert_classifier_forward(params, input_ids, attention_mask, n_heads=NH)
    jax.block_until_ready(logits)
    assert logits.shape == (B, OUT_DIM)
    print("KERNEL_OK")
</pallas_src>

<mosaic_0001>
module attributes {stable_mosaic.version = 11 : i64} {
  func.func @_ln_kernel(%arg0: i32, %arg1: memref<16x32xf32, #tpu.memory_space<vmem>>, %arg2: memref<1x32xf32, #tpu.memory_space<vmem>>, %arg3: memref<1x32xf32, #tpu.memory_space<vmem>>, %arg4: memref<16x32xbf16, #tpu.memory_space<vmem>>) attributes {dimension_semantics = [#tpu.dimension_semantics<parallel>], iteration_bounds = array<i64: 1>, scalar_prefetch = 0 : i64, scratch_operands = 0 : i64, tpu.core_type = #tpu.core_type<tc>, window_params = [{transform_indices = @transform_0, window_bounds = array<i64: 16, 32>}, {pipeline_mode = #tpu.pipeline_mode<synchronous>, transform_indices = @transform_1, window_bounds = array<i64: 1, 32>}, {pipeline_mode = #tpu.pipeline_mode<synchronous>, transform_indices = @transform_2, window_bounds = array<i64: 1, 32>}, {transform_indices = @transform_3, window_bounds = array<i64: 16, 32>}]} {
    %c0 = arith.constant 0 : index
    %c0_0 = arith.constant 0 : index
    %0 = vector.load %arg1[%c0, %c0_0] : memref<16x32xf32, #tpu.memory_space<vmem>>, vector<16x32xf32>
    %c0_1 = arith.constant 0 : index
    %c0_2 = arith.constant 0 : index
    %1 = vector.load %arg2[%c0_1, %c0_2] : memref<1x32xf32, #tpu.memory_space<vmem>>, vector<1x32xf32>
    %c0_3 = arith.constant 0 : index
    %c0_4 = arith.constant 0 : index
    %2 = vector.load %arg3[%c0_3, %c0_4] : memref<1x32xf32, #tpu.memory_space<vmem>>, vector<1x32xf32>
    %cst = arith.constant dense<0.000000e+00> : vector<16xf32>
    %3 = vector.multi_reduction <add>, %0, %cst [1] : vector<16x32xf32> to vector<16xf32>
    %4 = vector.shape_cast %3 : vector<16xf32> to vector<16x1xf32>
    %cst_5 = arith.constant 3.200000e+01 : f32
    %5 = vector.broadcast %cst_5 : f32 to vector<16x1xf32>
    %6 = arith.divf %4, %5 : vector<16x1xf32>
    %7 = vector.broadcast %6 : vector<16x1xf32> to vector<16x32xf32>
    %8 = arith.subf %0, %7 : vector<16x32xf32>
    %9 = vector.broadcast %6 : vector<16x1xf32> to vector<16x32xf32>
    %10 = arith.subf %0, %9 : vector<16x32xf32>
    %11 = arith.mulf %8, %10 : vector<16x32xf32>
    %cst_6 = arith.constant dense<0.000000e+00> : vector<16xf32>
    %12 = vector.multi_reduction <add>, %11, %cst_6 [1] : vector<16x32xf32> to vector<16xf32>
    %13 = vector.shape_cast %12 : vector<16xf32> to vector<16x1xf32>
    %cst_7 = arith.constant 3.200000e+01 : f32
    %14 = vector.broadcast %cst_7 : f32 to vector<16x1xf32>
    %15 = arith.divf %13, %14 : vector<16x1xf32>
    %16 = vector.broadcast %6 : vector<16x1xf32> to vector<16x32xf32>
    %17 = arith.subf %0, %16 : vector<16x32xf32>
    %cst_8 = arith.constant 9.99999996E-13 : f32
    %18 = vector.broadcast %cst_8 : f32 to vector<16x1xf32>
    %19 = arith.addf %15, %18 : vector<16x1xf32>
    %20 = math.rsqrt %19 : vector<16x1xf32>
    %21 = vector.broadcast %20 : vector<16x1xf32> to vector<16x32xf32>
    %22 = arith.mulf %17, %21 : vector<16x32xf32>
    %23 = vector.broadcast %1 : vector<1x32xf32> to vector<16x32xf32>
    %24 = arith.mulf %22, %23 : vector<16x32xf32>
    %25 = vector.broadcast %2 : vector<1x32xf32> to vector<16x32xf32>
    %26 = arith.addf %24, %25 : vector<16x32xf32>
    %27 = arith.truncf %26 : vector<16x32xf32> to vector<16x32xbf16>
    %c0_9 = arith.constant 0 : index
    %c0_10 = arith.constant 0 : index
    %28 = vector.load %arg4[%c0_9, %c0_10] : memref<16x32xbf16, #tpu.memory_space<vmem>>, vector<16x32xbf16>
    tpu.vector_store %arg4[%c0_9, %c0_10], %27 {strides = array<i32>} : memref<16x32xbf16, #tpu.memory_space<vmem>>, vector<16x32xbf16>,
    return
  }
  func.func @transform_0(%arg0: i32) -> (i32, i32) {
    %c0_i32 = arith.constant 0 : i32
    %c0_i32_0 = arith.constant 0 : i32
    return %arg0, %c0_i32 : i32, i32
  }
  func.func @transform_1(%arg0: i32) -> (i32, i32) {
    %c0_i32 = arith.constant 0 : i32
    %c0_i32_0 = arith.constant 0 : i32
    %c0_i32_1 = arith.constant 0 : i32
    return %c0_i32, %c0_i32_0 : i32, i32
  }
  func.func @transform_2(%arg0: i32) -> (i32, i32) {
    %c0_i32 = arith.constant 0 : i32
    %c0_i32_0 = arith.constant 0 : i32
    %c0_i32_1 = arith.constant 0 : i32
    return %c0_i32, %c0_i32_0 : i32, i32
  }
  func.func @transform_3(%arg0: i32) -> (i32, i32) {
    %c0_i32 = arith.constant 0 : i32
    %c0_i32_0 = arith.constant 0 : i32
    return %arg0, %c0_i32 : i32, i32
  }
}

</mosaic_0001>

<llo_original>
// kernel: tpu_custom_call.1
$region0: #{tpu_custom_call.1}
  #allocation0 [shape = 'u32[]', space=smem, size = 0x4, offset = 0x4, fixed_abs, tag = 'smem constant byte address 0x4 - core index']
  #allocation1 [shape = 'u32[144,128]{1,0:T(1,128)}', space=vmem, size = 0x12000, scoped, tag = 'internal scratch']
  %s0 = inlined_call_operand.hbm [shape: f32[16,32], index: 0, kind: input, shape index: {}]
  %s1 = inlined_call_operand.vmem [shape: f32[1,32], index: 1, kind: input, shape index: {}]
  %s2 = inlined_call_operand.vmem [shape: f32[1,32], index: 2, kind: input, shape index: {}]
  %s3 = inlined_call_operand.hbm [shape: bf16[16,32], index: 3, kind: output, shape index: {}]
  %s4 = sld [smem:[#allocation0]]
  $region26: #{tpu_custom_call.1} parent=0
    _
  %s6 = ssub.s32 1, %s4
  %s7 = scalar_select 0, %s6, %s4
  $region1: #{tpu_custom_call.1} parent=0
    #allocation2 [shape = 'u8[8192]{0}', space=vmem, size = 0x2000, scoped, tag = 'input window, operand 0, single buffered']
    #allocation3 [shape = 's32[1]{0}', space=sflag, size = 0x4, scoped, tag = 'scoped memory for tpu_custom_call.1']
    #allocation4 [shape = 's32[1]{0}', space=sflag, size = 0x4, scoped, tag = 'scoped memory for tpu_custom_call.1']
    #allocation5 [shape = 'u8[4096]{0}', space=vmem, size = 0x1000, scoped, tag = 'output window, operand 0, single buffered']
    %8 = vsyncpa [#allocation3], 0
    %9 = vsyncpa [#allocation4], 0
    // Predicated region
    $region2: #{tpu_custom_call.1} parent=1 // pred_check
      _
    $region3: #{tpu_custom_call.1} parent=1 // pred_check_branch
      %11 = sbr.rel (0) target = $region5
    $region4: #{tpu_custom_call.1} parent=1 // pred_region
      %s13 = ssub.s32 256, 256
      %14 = vsyncadd [#allocation3], %s13
      %s15 = sshll.u32 [#allocation2], 4
      %s16 = int_to_ptr.vmem [resolvable:$true] %s15
      %21 = dma.hbm_to_vmem [thread:$0]  %s0, 256, %s16, [#allocation3], 128, 128, 8
    $region5: #{tpu_custom_call.1} parent=1 // pred_fallthru
      _
    // Predicated region
    $region6: #{tpu_custom_call.1} parent=1 // pred_check
      _
    $region7: #{tpu_custom_call.1} parent=1 // pred_check_branch
      %23 = sbr.rel (0) target = $region9
    $region8: #{tpu_custom_call.1} parent=1 // pred_region
      _
    $region9: #{tpu_custom_call.1} parent=1 // pred_fallthru
      _
    // Predicated region
    $region10: #{tpu_custom_call.1} parent=1 // pred_check
      _
    $region11: #{tpu_custom_call.1} parent=1 // pred_check_branch
      %25 = sbr.rel (0) target = $region13
    $region12: #{tpu_custom_call.1} parent=1 // pred_region
      _
    $region13: #{tpu_custom_call.1} parent=1 // pred_fallthru
      _
    // Predicated region
    $region14: #{tpu_custom_call.1} parent=1 // pred_check
      _
    $region15: #{tpu_custom_call.1} parent=1 // pred_check_branch
      %27 = sbr.rel (0) target = $region17
    $region16: #{tpu_custom_call.1} parent=1 // pred_region
      %28 = dma.done [#allocation3], 256
    $region17: #{tpu_custom_call.1} parent=1 // pred_fallthru
      _
    %v29 = vld [vmem:[#allocation2] sm:$0xff]
    %v30 = vld [vmem:[#allocation2 + $0x8] sm:$0xff]
    %v31 = vld [vmem:[%s1] sm:$0x1]
    %v32 = vld [vmem:[%s2] sm:$0x1]
    %vm33 = vcmask 261120
    %v34 = vsel %vm33, %v29, 0.0
    %35 = vadd.xlane.f32.xlu0 %v34
    %v36 = vpop.xlane.xlu0 %35
    %v37 = vsel %vm33, %v30, 0.0
    %38 = vadd.xlane.f32.xlu0 %v37
    %v39 = vpop.xlane.xlu0 %38
    %v40 = vrcp.pop 32.0
    %v41 = vmul.f32 %v36, %v40
    %v42 = vmul.f32 %v39, %v40
    %v43 = vsub.f32 %v29, %v41
    %v44 = vsub.f32 %v30, %v42
    %v45 = vmul.f32 %v43, %v43
    %v46 = vmul.f32 %v44, %v44
    %v47 = vsel %vm33, %v45, 0.0
    %48 = vadd.xlane.f32.xlu0 %v47
    %v49 = vpop.xlane.xlu0 %48
    %v50 = vsel %vm33, %v46, 0.0
    %51 = vadd.xlane.f32.xlu0 %v50
    %v52 = vpop.xlane.xlu0 %51
    %v53 = vmul.f32 %v49, %v40
    %v54 = vmul.f32 %v52, %v40
    %v55 = vadd.f32 %v53, 1e-12
    %v56 = vadd.f32 %v54, 1e-12
    %v57 = vrsqrt.pop %v55
    %v58 = vrsqrt.pop %v56
    %v59 = vmul.f32 %v43, %v57
    %v60 = vmul.f32 %v44, %v58
    %v62 = vlaneseq
    %v63 = vshrl.u32 %v62, 7
    %v64 = vsub.s32 0, %v63
    %v65 = vrot.slane %v31, %v64
    %v67 = vmul.f32 %v59, %v65
    %v68 = vmul.f32 %v60, %v65
    %v70 = vlaneseq
    %v71 = vshrl.u32 %v70, 7
    %v72 = vsub.s32 0, %v71
    %v73 = vrot.slane %v32, %v72
    %v75 = vadd.f32 %v67, %v73
    %v76 = vadd.f32 %v68, %v73
    %v77 = vpack.c.bf16 %v76, %v75
    %v79 = vunpack.c.l.b16 %v77
    %v80 = vunpack.c.h.b16 %v77
    %v81 = vpack.c.b16 %v79, %v79
    %v82 = vpack.c.b16 %v80, %v80
    %vm85 = vcmask 257024
    %86 = vst.msk [vmem:[#allocation5] sm:$0xf] %vm85, %v81
    %87 = vst.msk [vmem:[#allocation5 + $0x4] sm:$0xf] %vm85, %v82
    // Predicated region
    $region18: #{tpu_custom_call.1} parent=1 // pred_check
      _
    $region19: #{tpu_custom_call.1} parent=1 // pred_check_branch
      %89 = sbr.rel (0) target = $region21
    $region20: #{tpu_custom_call.1} parent=1 // pred_region
      %s91 = ssub.s32 128, 128
      %92 = vsyncadd [#allocation4], %s91
      %s93 = sshll.u32 [#allocation5], 4
      %s94 = int_to_ptr.vmem [resolvable:$true] %s93
      %99 = dma.vmem_to_hbm [thread:$0]  %s94, 128, %s3, [#allocation4], 64, 64, 4
    $region21: #{tpu_custom_call.1} parent=1 // pred_fallthru
      _
    // Predicated region
    $region22: #{tpu_custom_call.1} parent=1 // pred_check
      _
    $region23: #{tpu_custom_call.1} parent=1 // pred_check_branch
      %101 = sbr.rel (0) target = $region25
    $region24: #{tpu_custom_call.1} parent=1 // pred_region
      %102 = dma.done [#allocation4], 128
    $region25: #{tpu_custom_call.1} parent=1 // pred_fallthru
      _
    %103 = vsyncpa [#allocation3], 1
    %104 = vsyncpa [#allocation4], 1

</llo_original>
